<compile_context>
chip_gen: v7x
topology: tpu7x:2x2x1
jax: 0.10.0
libtpu: 0.0.40
codegen_flags: <defaults>
</compile_context>

<pallas_src>
import functools

import jax
import jax.numpy as jnp
from jax.experimental import pallas as pl
from jax.experimental.pallas import tpu as pltpu


def _round_up(x, m):
    return ((x + m - 1) // m) * m


def _gram_kernel(x_ref, inner_ref, ssq_ref, acc_ref, ssq_acc_ref):
    # x_ref:     (1, C, TILE)  current HW chunk of one batch element
    # inner_ref: (1, C, C)     per-batch Gram matrix (written on last chunk)
    # ssq_ref:   (1, C, 1)     per-channel sum of squares (written on last chunk)
    # acc_ref / ssq_acc_ref: VMEM f32 accumulators, persistent across the grid.
    k = pl.program_id(1)

    @pl.when(k == 0)
    def _():
        acc_ref[...] = jnp.zeros_like(acc_ref)
        ssq_acc_ref[...] = jnp.zeros_like(ssq_acc_ref)

    x = x_ref[0]  # (C, TILE)
    # Partial Gram: X_chunk @ X_chunk^T (contract over the lane axis, MXU).
    acc_ref[...] += jax.lax.dot_general(
        x, x, (((1,), (1,)), ((), ())), preferred_element_type=jnp.float32
    )
    # Per-channel sum of squares while the chunk is already in VMEM (VPU+XLU).
    ssq_acc_ref[...] += jnp.sum(x * x, axis=-1, keepdims=True)

    @pl.when(k == pl.num_programs(1) - 1)
    def _():
        inner_ref[0] = acc_ref[...]
        ssq_ref[0] = ssq_acc_ref[...]


def _gdn_apply_kernel(x_ref, w_ref, beta_ref, out_ref, *, inverse):
    # x_ref:   (1, C, TILE)
    # w_ref:   (1, C, C)   precomputed gamma * (1 + cos) for this batch element
    # beta_ref:(C, 1)      reparameterized beta
    x = x_ref[0]                                   # (C, TILE)
    w = w_ref[0]                                   # (C, C)
    # Grouped 1x1 conv == per-batch (C,C) @ (C,TILE) matmul + per-channel bias.
    norm = jnp.dot(w, jnp.abs(x), preferred_element_type=jnp.float32)
    norm = norm + beta_ref[...]
    if inverse:
        out_ref[0] = x * norm
    else:
        # Exact divide kept for bit-accuracy vs. the f32 reference; an
        # x * pl.reciprocal(norm, approx=True) variant trades ~1e-3 rel error
        # for an EUP-slot reciprocal (minor win, kernel is HBM-bound anyway).
        out_ref[0] = x / norm


def gdn_forward(x_nchw, beta_param, gamma_param, *, beta_min=1e-6,
                gamma_min=1e-6, min_boundary=2.0 ** (-5), inverse=False,
                lane_tile=2048):
    B, C, H, W = x_nchw.shape
    HW = H * W
    reparam_offset = min_boundary ** 2
    beta_bound = (beta_min + reparam_offset) ** 0.5
    gamma_bound = (gamma_min + reparam_offset) ** 0.5

    # Parameter reparameterization (tiny glue, matches PyTorch forward;
    # SetMinBoundary.forward is just an elementwise max).
    gamma_p = (gamma_param + gamma_param.T) / 2.0
    beta = jnp.maximum(beta_param, beta_bound) ** 2 - reparam_offset      # (C,)
    gamma = jnp.maximum(gamma_p, gamma_bound) ** 2 - reparam_offset       # (C, C)

    # Lane-tile selection: multiples of 128, capped at `lane_tile`, then pad
    # HW up to a whole number of tiles (zero padding is numerically neutral).
    tile = lane_tile if HW >= lane_tile else _round_up(HW, 128)
    HW_pad = _round_up(HW, tile)
    n_tiles = HW_pad // tile

    x = x_nchw.reshape(B, C, HW).astype(jnp.float32)
    # TODO(synk): for bandwidth-bound deployments, feed the matmuls with bf16 x
    # (f32 accumulation) to halve HBM read traffic; kept f32 for exact parity.
    if HW_pad != HW:
        x = jnp.pad(x, ((0, 0), (0, 0), (0, HW_pad - HW)))

    # --- Kernel 1: per-batch Gram over HW (accumulator pattern) + per-channel
    #     sum-of-squares emitted as a second output. ---
    inner, ssq = pl.pallas_call(
        _gram_kernel,
        out_shape=(jax.ShapeDtypeStruct((B, C, C), jnp.float32),
                   jax.ShapeDtypeStruct((B, C, 1), jnp.float32)),
        grid=(B, n_tiles),
        in_specs=[pl.BlockSpec((1, C, tile), lambda b, k: (b, 0, k))],
        out_specs=(pl.BlockSpec((1, C, C), lambda b, k: (b, 0, 0)),
                   pl.BlockSpec((1, C, 1), lambda b, k: (b, 0, 0))),
        scratch_shapes=[pltpu.VMEM((C, C), jnp.float32),
                        pltpu.VMEM((C, 1), jnp.float32)],
        compiler_params=pltpu.CompilerParams(
            dimension_semantics=("parallel", "arbitrary")),
    )(x)

    # Tiny cross-batch glue (sizes (B,C) / (C,C) / (B,C,C)):
    nrm = jnp.sqrt(ssq[:, :, 0])                       # (B, C)
    norm_pro = nrm.T @ nrm                             # (C, C) sums over batch
    cos = inner / (norm_pro[None] + 1e-6)              # (B, C, C)
    weight = gamma[None] * (1.0 + cos)                 # (B, C, C)
    beta_col = beta.reshape(C, 1)

    # --- Kernel 2: apply grouped 1x1 conv (w @ |x| + beta) and divide/multiply,
    #     tiled over HW with lane-dense (multiple-of-128) output stores. ---
    out = pl.pallas_call(
        functools.partial(_gdn_apply_kernel, inverse=inverse),
        out_shape=jax.ShapeDtypeStruct((B, C, HW_pad), jnp.float32),
        grid=(B, n_tiles),
        in_specs=[
            pl.BlockSpec((1, C, tile), lambda b, t: (b, 0, t)),
            pl.BlockSpec((1, C, C), lambda b, t: (b, 0, 0)),
            pl.BlockSpec((C, 1), lambda b, t: (0, 0)),
        ],
        out_specs=pl.BlockSpec((1, C, tile), lambda b, t: (b, 0, t)),
        compiler_params=pltpu.CompilerParams(
            dimension_semantics=("parallel", "parallel")),
    )(x, weight, beta_col)

    if HW_pad != HW:
        out = out[:, :, :HW]
    return out.reshape(B, C, H, W)


def gdn_reference(x_nchw, beta_param, gamma_param, *, beta_min=1e-6,
                  gamma_min=1e-6, min_boundary=2.0 ** (-5), inverse=False):
    """Pure-JAX mirror of the PyTorch forward, for verification."""
    B, C, H, W = x_nchw.shape
    reparam_offset = min_boundary ** 2
    beta_bound = (beta_min + reparam_offset) ** 0.5
    gamma_bound = (gamma_min + reparam_offset) ** 0.5
    gamma_p = (gamma_param + gamma_param.T) / 2.0
    beta = jnp.maximum(beta_param, beta_bound) ** 2 - reparam_offset
    gamma = jnp.maximum(gamma_p, gamma_bound) ** 2 - reparam_offset
    X = x_nchw.reshape(B, C, -1)
    inner = jnp.einsum('bci,bdi->bcd', X, X)
    nrm = jnp.sqrt(jnp.sum(X * X, axis=2))                # (B, C)
    norm_pro = jnp.einsum('bi,bj->ij', nrm, nrm)          # (C, C) sums over batch
    cos = inner / (norm_pro + 1e-6)
    weight = gamma[None] * (1.0 + cos)                    # (B, C, C)
    norm = jnp.einsum('bcd,bdhw->bchw', weight, jnp.abs(x_nchw))
    norm = norm + beta[None, :, None, None]
    return x_nchw * norm if inverse else x_nchw / norm


if __name__ == "__main__":
    key = jax.random.PRNGKey(0)
    min_boundary = 2.0 ** (-5)
    reparam_offset = min_boundary ** 2
    beta_init, gamma_init = 0.1, 0.1

    def make_params(C):
        beta_param = jnp.sqrt(jnp.ones((C,), jnp.float32) * beta_init + reparam_offset)
        gamma_param = jnp.sqrt(jnp.eye(C, dtype=jnp.float32) * gamma_init + reparam_offset)
        return beta_param, gamma_param

    # Case 1: HW a multiple of 128, GDN (divide) path.
    B, C, H, W = 2, 4, 16, 16
    beta_param, gamma_param = make_params(C)
    k1, k2 = jax.random.split(key)
    x1 = jax.random.normal(k1, (B, C, H, W), dtype=jnp.float32)
    out1 = jax.block_until_ready(gdn_forward(x1, beta_param, gamma_param, inverse=False))
    ref1 = gdn_reference(x1, beta_param, gamma_param, inverse=False)
    assert out1.shape == (B, C, H, W)
    assert jnp.allclose(out1, ref1, atol=1e-4, rtol=1e-4), "GDN mismatch vs reference"

    # Case 2: HW not a multiple of 128 (exercises zero-padding), IGDN path.
    B2, C2, H2, W2 = 2, 4, 10, 10
    x2 = jax.random.normal(k2, (B2, C2, H2, W2), dtype=jnp.float32)
    out2 = jax.block_until_ready(gdn_forward(x2, beta_param, gamma_param, inverse=True))
    ref2 = gdn_reference(x2, beta_param, gamma_param, inverse=True)
    assert out2.shape == (B2, C2, H2, W2)
    assert jnp.allclose(out2, ref2, atol=1e-4, rtol=1e-4), "IGDN mismatch vs reference"

    print("KERNEL_OK")
</pallas_src>

<mosaic_0001>
module attributes {stable_mosaic.version = 11 : i64} {
  func.func @_gram_kernel(%arg0: i32, %arg1: i32, %arg2: memref<1x4x256xf32, #tpu.memory_space<vmem>>, %arg3: memref<1x4x4xf32, #tpu.memory_space<vmem>>, %arg4: memref<1x4x1xf32, #tpu.memory_space<vmem>>, %arg5: memref<4x4xf32, #tpu.memory_space<vmem>>, %arg6: memref<4x1xf32, #tpu.memory_space<vmem>>) attributes {dimension_semantics = [#tpu.dimension_semantics<parallel>, #tpu.dimension_semantics<arbitrary>], iteration_bounds = array<i64: 2, 1>, scalar_prefetch = 0 : i64, scratch_operands = 2 : i64, tpu.core_type = #tpu.core_type<tc>, window_params = [{transform_indices = @transform_0, window_bounds = array<i64: 1, 4, 256>}, {transform_indices = @transform_1, window_bounds = array<i64: 1, 4, 4>}, {transform_indices = @transform_2, window_bounds = array<i64: 1, 4, 1>}]} {
    %c0_i32 = arith.constant 0 : i32
    %0 = arith.cmpi eq, %arg1, %c0_i32 : i32
    %1 = arith.extui %0 : i1 to i32
    %c0_i32_0 = arith.constant 0 : i32
    %2 = arith.cmpi ne, %1, %c0_i32_0 : i32
    scf.if %2 {
      %cst_14 = arith.constant 0.000000e+00 : f32
      %18 = vector.broadcast %cst_14 : f32 to vector<4x4xf32>
      %c0_15 = arith.constant 0 : index
      %c0_16 = arith.constant 0 : index
      %19 = vector.load %arg5[%c0_15, %c0_16] : memref<4x4xf32, #tpu.memory_space<vmem>>, vector<4x4xf32>
      tpu.vector_store %arg5[%c0_15, %c0_16], %18 {strides = array<i32>} : memref<4x4xf32, #tpu.memory_space<vmem>>, vector<4x4xf32>,
      %cst_17 = arith.constant 0.000000e+00 : f32
      %20 = vector.broadcast %cst_17 : f32 to vector<4x1xf32>
      %c0_18 = arith.constant 0 : index
      %c0_19 = arith.constant 0 : index
      %21 = vector.load %arg6[%c0_18, %c0_19] : memref<4x1xf32, #tpu.memory_space<vmem>>, vector<4x1xf32>
      tpu.vector_store %arg6[%c0_18, %c0_19], %20 {strides = array<i32>} : memref<4x1xf32, #tpu.memory_space<vmem>>, vector<4x1xf32>,
    } else {
    }
    %c0 = arith.constant 0 : index
    %c0_1 = arith.constant 0 : index
    %c0_2 = arith.constant 0 : index
    %3 = vector.load %arg2[%c0, %c0_1, %c0_2] : memref<1x4x256xf32, #tpu.memory_space<vmem>>, vector<1x4x256xf32>
    %4 = vector.shape_cast %3 : vector<1x4x256xf32> to vector<4x256xf32>
    %c0_3 = arith.constant 0 : index
    %c0_4 = arith.constant 0 : index
    %5 = vector.load %arg5[%c0_3, %c0_4] : memref<4x4xf32, #tpu.memory_space<vmem>>, vector<4x4xf32>
    %cst = arith.constant dense<0.000000e+00> : vector<4x4xf32>
    %6 = tpu.matmul %4, %4, %cst {dimension_numbers = #tpu.dot_dimension_numbers<[1], [1], [0], [0], [0, 0, 1, 0], [], []>} : vector<4x256xf32>, vector<4x256xf32>, vector<4x4xf32> -> vector<4x4xf32>
    %7 = arith.addf %5, %6 : vector<4x4xf32>
    %c0_5 = arith.constant 0 : index
    %c0_6 = arith.constant 0 : index
    %8 = vector.load %arg5[%c0_5, %c0_6] : memref<4x4xf32, #tpu.memory_space<vmem>>, vector<4x4xf32>
    tpu.vector_store %arg5[%c0_5, %c0_6], %7 {strides = array<i32>} : memref<4x4xf32, #tpu.memory_space<vmem>>, vector<4x4xf32>,
    %c0_7 = arith.constant 0 : index
    %c0_8 = arith.constant 0 : index
    %9 = vector.load %arg6[%c0_7, %c0_8] : memref<4x1xf32, #tpu.memory_space<vmem>>, vector<4x1xf32>
    %10 = arith.mulf %4, %4 : vector<4x256xf32>
    %cst_9 = arith.constant dense<0.000000e+00> : vector<4xf32>
    %11 = vector.multi_reduction <add>, %10, %cst_9 [1] : vector<4x256xf32> to vector<4xf32>
    %12 = vector.shape_cast %11 : vector<4xf32> to vector<4x1xf32>
    %13 = arith.addf %9, %12 : vector<4x1xf32>
    %c0_10 = arith.constant 0 : index
    %c0_11 = arith.constant 0 : index
    %14 = vector.load %arg6[%c0_10, %c0_11] : memref<4x1xf32, #tpu.memory_space<vmem>>, vector<4x1xf32>
    tpu.vector_store %arg6[%c0_10, %c0_11], %13 {strides = array<i32>} : memref<4x1xf32, #tpu.memory_space<vmem>>, vector<4x1xf32>,
    %c0_i32_12 = arith.constant 0 : i32
    %15 = arith.cmpi eq, %arg1, %c0_i32_12 : i32
    %16 = arith.extui %15 : i1 to i32
    %c0_i32_13 = arith.constant 0 : i32
    %17 = arith.cmpi ne, %16, %c0_i32_13 : i32
    scf.if %17 {
      %c0_14 = arith.constant 0 : index
      %c0_15 = arith.constant 0 : index
      %18 = vector.load %arg5[%c0_14, %c0_15] : memref<4x4xf32, #tpu.memory_space<vmem>>, vector<4x4xf32>
      %c0_16 = arith.constant 0 : index
      %c0_17 = arith.constant 0 : index
      %c0_18 = arith.constant 0 : index
      %19 = vector.load %arg3[%c0_16, %c0_17, %c0_18] : memref<1x4x4xf32, #tpu.memory_space<vmem>>, vector<1x4x4xf32>
      %20 = vector.shape_cast %19 : vector<1x4x4xf32> to vector<4x4xf32>
      %21 = vector.shape_cast %18 : vector<4x4xf32> to vector<1x4x4xf32>
      tpu.vector_store %arg3[%c0_16, %c0_17, %c0_18], %21 {strides = array<i32>} : memref<1x4x4xf32, #tpu.memory_space<vmem>>, vector<1x4x4xf32>,
      %c0_19 = arith.constant 0 : index
      %c0_20 = arith.constant 0 : index
      %22 = vector.load %arg6[%c0_19, %c0_20] : memref<4x1xf32, #tpu.memory_space<vmem>>, vector<4x1xf32>
      %c0_21 = arith.constant 0 : index
      %c0_22 = arith.constant 0 : index
      %c0_23 = arith.constant 0 : index
      %23 = vector.load %arg4[%c0_21, %c0_22, %c0_23] : memref<1x4x1xf32, #tpu.memory_space<vmem>>, vector<1x4x1xf32>
      %24 = vector.shape_cast %23 : vector<1x4x1xf32> to vector<4x1xf32>
      %25 = vector.shape_cast %22 : vector<4x1xf32> to vector<1x4x1xf32>
      tpu.vector_store %arg4[%c0_21, %c0_22, %c0_23], %25 {strides = array<i32>} : memref<1x4x1xf32, #tpu.memory_space<vmem>>, vector<1x4x1xf32>,
    } else {
    }
    return
  }
  func.func @transform_0(%arg0: i32, %arg1: i32) -> (i32, i32, i32) {
    %c0_i32 = arith.constant 0 : i32
    %c0_i32_0 = arith.constant 0 : i32
    return %arg0, %c0_i32, %arg1 : i32, i32, i32
  }
  func.func @transform_1(%arg0: i32, %arg1: i32) -> (i32, i32, i32) {
    %c0_i32 = arith.constant 0 : i32
    %c0_i32_0 = arith.constant 0 : i32
    %c0_i32_1 = arith.constant 0 : i32
    return %arg0, %c0_i32, %c0_i32_0 : i32, i32, i32
  }
  func.func @transform_2(%arg0: i32, %arg1: i32) -> (i32, i32, i32) {
    %c0_i32 = arith.constant 0 : i32
    %c0_i32_0 = arith.constant 0 : i32
    %c0_i32_1 = arith.constant 0 : i32
    return %arg0, %c0_i32, %c0_i32_0 : i32, i32, i32
  }
}

</mosaic_0001>

<llo_original>
// kernel: tpu_custom_call.1
$region0: #{tpu_custom_call.1}
  #allocation0 [shape = 'u32[]', space=smem, size = 0x4, offset = 0x4, fixed_abs, tag = 'smem constant byte address 0x4 - core index']
  #allocation1 [shape = 'u32[144,128]{1,0:T(1,128)}', space=vmem, size = 0x12000, scoped, tag = 'internal scratch']
  #allocation2 [shape = 'f32[4,4]{1,0:T(4,128)}', space=vmem, size = 0x800, scoped, tag = 'scratch operand']
  #allocation3 [shape = 'f32[4,1]{1,0:T(4,128)}', space=vmem, size = 0x800, scoped, tag = 'scratch operand']
  %s0 = inlined_call_operand.hbm [shape: f32[2,4,256], index: 0, kind: input, shape index: {}]
  %s1 = inlined_call_operand.hbm [shape: f32[2,4,4], index: 1, kind: output, shape index: {0}]
  %s2 = inlined_call_operand.vmem [shape: f32[2,4,1], index: 2, kind: output, shape index: {1}]
  %3 = xla_tuple %s1, %s2
  %s4 = sld [smem:[#allocation0]]
  $region57: #{tpu_custom_call.1} parent=0
    _
  %s6 = ssub.s32 1, %s4
  %s7 = scalar_select 0, %s6, %s4
  $region1: #{tpu_custom_call.1} parent=0
    #allocation4 [shape = 'u8[8192]{0}', space=vmem, size = 0x2000, scoped, tag = 'input window, operand 0']
    #allocation5 [shape = 's32[2]{0}', space=sflag, size = 0x8, scoped, tag = 'scoped memory for tpu_custom_call.1']
    #allocation6 [shape = 's32[2]{0}', space=sflag, size = 0x8, scoped, tag = 'scoped memory for tpu_custom_call.1']
    #allocation7 [shape = 'u8[4096]{0}', space=vmem, size = 0x1000, scoped, tag = 'output window, operand 0']
    %8 = vsyncpa [#allocation5], 0
    %s9 = scalar_lea.sflag [#allocation5], 1
    %10 = vsyncpa %s9, 0
    %11 = vsyncpa [#allocation6], 0
    %s12 = scalar_lea.sflag [#allocation6], 1
    %13 = vsyncpa %s12, 0
    loop: start=0, step=1, limit=4
    $region2: #{tpu_custom_call.1} parent=1 // loop_pre_header
      _
    $region3: #{tpu_custom_call.1} parent=1 // loop_header
      %s15 = sphi 0, %s19
      %p16 = scmp.ge.s32.totalorder %s15, 4
      %s22 = sphi 0, %s34
      %s23 = sphi 0, %s30
      %s24 = sphi 0, %s22
      %s25 = sphi 0, %s23
      %s26 = sphi 0, %s24
      %s27 = sphi 0, %s25
      %s39 = sphi 0, %s41
      %s42 = sphi 0, %s39
      %s43 = sphi 0, %s42
      %s59 = sphi 0, %s43
      %s65 = sphi 0, %s67
      %s68 = sphi 0, %s65
      %s69 = sphi 0, %s68
      %s85 = sphi 0, %s69
      %s91 = sphi 0, %s93
      %s94 = sphi 0, %s91
      %s95 = sphi 0, %s94
      %s111 = sphi 0, %s95
    $region4: #{tpu_custom_call.1} parent=1 // loop_header_branch
      %18 = sbr.rel (%p16) target = $region8
    $region5: #{tpu_custom_call.1} parent=1 // loop_body
      %s20 = ssub.s32 %s15, 1
      %s21 = ssub.s32 %s15, 2
      %s28 = sadd.s32 1, %s23
      %p29 = scmp.ge.s32.totalorder %s28, 1
      %s30 = scalar_select %p29, 0, %s28
      %s31 = sadd.s32 1, %s22
      %s32 = scalar_select %p29, %s31, %s22
      %p33 = scmp.ge.s32.totalorder %s32, 2
      %s34 = scalar_select %p33, 0, %s32
      %s35 = ssub.s32 %s22, %s34
      %s36 = ssub.s32 %s23, %s30
      %s37 = sor.u32 %s35, %s36
      %p38 = scmp.eq.s32.totalorder %s37, 0
      %s40 = sadd.s32 %s39, 1
      %s41 = scalar_select %p38, %s39, %s40
      %p44 = pneg %p38
      %p45 = scmp.eq.s32.totalorder %s15, 1
      %p46 = por %p44, %p45
      %p47 = scmp.ne.s32.totalorder %s39, %s42
      %p48 = scmp.eq.s32.totalorder %s15, 0
      %p49 = por %p47, %p48
      %p50 = scmp.ne.s32.totalorder %s39, %s42
      %p51 = scmp.eq.s32.totalorder %s20, 1
      %p52 = por %p50, %p51
      %p53 = scmp.ne.s32.totalorder %s42, %s43
      %p54 = scmp.eq.s32.totalorder %s20, 0
      %p55 = por %p53, %p54
      %p56 = scmp.ne.s32.totalorder %s42, %s43
      %p57 = scmp.eq.s32.totalorder %s21, 1
      %p58 = por %p56, %p57
      %p60 = scmp.ne.s32.totalorder %s43, %s59
      %p61 = scmp.eq.s32.totalorder %s21, 0
      %p62 = por %p60, %p61
      %s63 = ssub.s32 %s22, %s34
      %p64 = scmp.eq.s32.totalorder %s63, 0
      %s66 = sadd.s32 %s65, 1
      %s67 = scalar_select %p64, %s65, %s66
      %p70 = pneg %p64
      %p71 = scmp.eq.s32.totalorder %s15, 1
      %p72 = por %p70, %p71
      %p73 = scmp.ne.s32.totalorder %s65, %s68
      %p74 = scmp.eq.s32.totalorder %s15, 0
      %p75 = por %p73, %p74
      %p76 = scmp.ne.s32.totalorder %s65, %s68
      %p77 = scmp.eq.s32.totalorder %s20, 1
      %p78 = por %p76, %p77
      %p79 = scmp.ne.s32.totalorder %s68, %s69
      %p80 = scmp.eq.s32.totalorder %s20, 0
      %p81 = por %p79, %p80
      %p82 = scmp.ne.s32.totalorder %s68, %s69
      %p83 = scmp.eq.s32.totalorder %s21, 1
      %p84 = por %p82, %p83
      %p86 = scmp.ne.s32.totalorder %s69, %s85
      %p87 = scmp.eq.s32.totalorder %s21, 0
      %p88 = por %p86, %p87
      %s89 = ssub.s32 %s22, %s34
      %p90 = scmp.eq.s32.totalorder %s89, 0
      %s92 = sadd.s32 %s91, 1
      %s93 = scalar_select %p90, %s91, %s92
      %p96 = pneg %p90
      %p97 = scmp.eq.s32.totalorder %s15, 1
      %p98 = por %p96, %p97
      %p99 = scmp.ne.s32.totalorder %s91, %s94
      %p100 = scmp.eq.s32.totalorder %s15, 0
      %p101 = por %p99, %p100
      %p102 = scmp.ne.s32.totalorder %s91, %s94
      %p103 = scmp.eq.s32.totalorder %s20, 1
      %p104 = por %p102, %p103
      %p105 = scmp.ne.s32.totalorder %s94, %s95
      %p106 = scmp.eq.s32.totalorder %s20, 0
      %p107 = por %p105, %p106
      %p108 = scmp.ne.s32.totalorder %s94, %s95
      %p109 = scmp.eq.s32.totalorder %s21, 1
      %p110 = por %p108, %p109
      %p112 = scmp.ne.s32.totalorder %s95, %s111
      %p113 = scmp.eq.s32.totalorder %s21, 0
      %p114 = por %p112, %p113
      %p115 = scmp.le.s32.totalorder 1, %s15
      %p116 = scmp.lt.s32.totalorder %s15, 3
      %p117 = pnand %p115, %p116
      %p118 = pneg %p117
      // Predicated region
      $region9: #{tpu_custom_call.1} parent=5 // pred_check
        _
      $region10: #{tpu_custom_call.1} parent=5 // pred_check_branch
        %120 = sbr.rel (%p117) target = $region12
      $region11: #{tpu_custom_call.1} parent=5 // pred_region
        %s121 = ssub.s32 %s15, 1
      $region12: #{tpu_custom_call.1} parent=5 // pred_fallthru
        _
      %p122 = scmp.lt.s32.totalorder %s15, 2
      // Predicated region
      $region13: #{tpu_custom_call.1} parent=5 // pred_check
        %p123 = pneg %p122
      $region14: #{tpu_custom_call.1} parent=5 // pred_check_branch
        %125 = sbr.rel (%p123) target = $region16
      $region15: #{tpu_custom_call.1} parent=5 // pred_region
        // Predicated region
        $region17: #{tpu_custom_call.1} parent=15 // pred_check
          %p126 = pneg %p49
        $region18: #{tpu_custom_call.1} parent=15 // pred_check_branch
          %128 = sbr.rel (%p126) target = $region20
        $region19: #{tpu_custom_call.1} parent=15 // pred_region
          %s129 = sand.u32 %s39, 1
          %s130 = scalar_lea.sflag [#allocation5], %s129
          %s131 = sand.u32 %s39, 1
          %s132 = smul.addr %s131, 8
          %s133 = scalar_lea.vmem [#allocation4], %s132
          %s134 = smul.u32 2, %s23
          %s136 = ssub.s32 128, 128
          %137 = vsyncadd %s130, %s136
          %s138 = smul.addr %s22, 2
          %s139 = sadd.s32 %s134, %s138
          %s140 = smul.addr %s139, 64
          %s141 = scalar_lea.hbm %s0, %s140
          %s143 = sshll.u32 %s133, 4
          %s144 = int_to_ptr.vmem [resolvable:$true] %s143
          %146 = dma.hbm_to_vmem [thread:$0]  %s141, 128, %s144, %s130
        $region20: #{tpu_custom_call.1} parent=15 // pred_fallthru
          _
      $region16: #{tpu_custom_call.1} parent=5 // pred_fallthru
        _
      %p147 = scmp.le.s32.totalorder 1, %s15
      %p148 = scmp.lt.s32.totalorder %s15, 3
      %p149 = pnand %p147, %p148
      %p150 = pneg %p149
      // Predicated region
      $region21: #{tpu_custom_call.1} parent=5 // pred_check
        _
      $region22: #{tpu_custom_call.1} parent=5 // pred_check_branch
        %152 = sbr.rel (%p149) target = $region24
      $region23: #{tpu_custom_call.1} parent=5 // pred_region
        %s153 = ssub.s32 %s15, 1
        %s154 = sand.u32 %s42, 1
        %s155 = scalar_lea.sflag [#allocation5], %s154
        %s156 = sand.u32 %s42, 1
        %s157 = smul.addr %s156, 8
        %s158 = scalar_lea.vmem [#allocation4], %s157
        // Predicated region
        $region25: #{tpu_custom_call.1} parent=23 // pred_check
          %p159 = pneg %p55
        $region26: #{tpu_custom_call.1} parent=23 // pred_check_branch
          %161 = sbr.rel (%p159) target = $region28
        $region27: #{tpu_custom_call.1} parent=23 // pred_region
          %162 = dma.done %s155, 128
        $region28: #{tpu_custom_call.1} parent=23 // pred_fallthru
          _
        %s163 = sand.u32 %s42, 1
        %s164 = scalar_lea.sflag [#allocation5], %s163
        %s165 = sand.u32 %s42, 1
        %s166 = smul.addr %s165, 8
        %s167 = scalar_lea.vmem [#allocation4], %s166
        %p168 = pneg %p55
        %p169 = pneg %p52
        %p170 = pneg %p81
        %p171 = pneg %p78
        %s172 = sand.u32 %s68, 1
        %s173 = scalar_lea.sflag [#allocation6], %s172
        %s174 = sand.u32 %s68, 1
        %s175 = smul.addr %s174, 4
        %s176 = scalar_lea.vmem [#allocation7], %s175
        %p177 = pneg %p107
        %p178 = pneg %p104
        %p179 = scmp.lt.s32.totalorder %s24, 1
        %s180 = scalar_select %p179, %s24, 1
        %s181 = smul.addr %s180, 4
        %s182 = scalar_lea.vmem %s2, %s181
        %s183 = smul.u32 2, %s25
        %p184 = scmp.lt.s32.totalorder %s24, 1
        %s185 = scalar_select %p184, %s24, 1
        %s186 = smul.addr %s185, 4
        %s187 = scalar_lea.vmem %s2, %s186
        %p188 = scmp.eq.s32.totalorder %s25, 0
        // Predicated region
        $region29: #{tpu_custom_call.1} parent=23 // pred_check
          %p189 = pneg %p188
        $region30: #{tpu_custom_call.1} parent=23 // pred_check_branch
          %191 = sbr.rel (%p189) target = $region32
        $region31: #{tpu_custom_call.1} parent=23 // pred_region
          %vm192 = vcmask 27648
          %193 = vst.msk [vmem:[#allocation2] sm:$0xf] %vm192, 0.0
          %vm194 = vcmask 3072
          %195 = vst.msk [vmem:[#allocation3] sm:$0xf] %vm194, 0.0
        $region32: #{tpu_custom_call.1} parent=23 // pred_fallthru
          _
        %v196 = vld [vmem:[%s158] sm:$0xff]
        %v197 = vld [vmem:[#allocation2] sm:$0xf]
        %v199 = vcombine.high %v196, %v196
        %201 = vmatprep.subr.mxu0 %v199
        %202 = vmatpush1.xpose.msra.mxu0 %v196
        %203 = vmatprep.subr.mxu0 0.0
        %204 = vmatpush1.xpose.msra.mxu0 0.0
        %205 = vmatprep.subr.mxu0 0.0
        %206 = vmatpush1.xpose.msra.mxu0 0.0
        %207 = vmatprep.subr.mxu0 0.0
        %208 = vmatpush1.xpose.msra.mxu0 0.0
        %209 = vmatprep.subr.mxu0 0.0
        %210 = vmatpush1.xpose.msra.mxu0 0.0
        %211 = vmatprep.subr.mxu0 0.0
        %212 = vmatpush1.xpose.msra.mxu0 0.0
        %213 = vmatprep.subr.mxu0 0.0
        %214 = vmatpush1.xpose.msra.mxu0 0.0
        %215 = vmatprep.subr.mxu0 0.0
        %216 = vmatpush1.xpose.msra.mxu0 0.0
        %217 = vmatprep.subr.mxu0 0.0
        %218 = vmatpush1.xpose.msra.mxu0 0.0
        %219 = vmatprep.subr.mxu0 0.0
        %220 = vmatpush1.xpose.msra.mxu0 0.0
        %221 = vmatprep.subr.mxu0 0.0
        %222 = vmatpush1.xpose.msra.mxu0 0.0
        %223 = vmatprep.subr.mxu0 0.0
        %224 = vmatpush1.xpose.msra.mxu0 0.0
        %225 = vmatprep.subr.mxu0 0.0
        %226 = vmatpush1.xpose.msra.mxu0 0.0
        %227 = vmatprep.subr.mxu0 0.0
        %228 = vmatpush1.xpose.msra.mxu0 0.0
        %229 = vmatprep.subr.mxu0 0.0
        %230 = vmatpush1.xpose.msra.mxu0 0.0
        %231 = vmatprep.subr.mxu0 0.0
        %232 = vmatpush1.xpose.msra.mxu0 0.0
        %233 = vmatprep.subr.mxu0 0.0
        %234 = vmatpush1.xpose.msra.mxu0 0.0
        %235 = vmatprep.subr.mxu0 0.0
        %236 = vmatpush1.xpose.msra.mxu0 0.0
        %237 = vmatprep.subr.mxu0 0.0
        %238 = vmatpush1.xpose.msra.mxu0 0.0
        %239 = vmatprep.subr.mxu0 0.0
        %240 = vmatpush1.xpose.msra.mxu0 0.0
        %241 = vmatprep.subr.mxu0 0.0
        %242 = vmatpush1.xpose.msra.mxu0 0.0
        %243 = vmatprep.subr.mxu0 0.0
        %244 = vmatpush1.xpose.msra.mxu0 0.0
        %245 = vmatprep.subr.mxu0 0.0
        %246 = vmatpush1.xpose.msra.mxu0 0.0
        %247 = vmatprep.subr.mxu0 0.0
        %248 = vmatpush1.xpose.msra.mxu0 0.0
        %249 = vmatprep.subr.mxu0 0.0
        %250 = vmatpush1.xpose.msra.mxu0 0.0
        %251 = vmatprep.subr.mxu0 0.0
        %252 = vmatpush1.xpose.msra.mxu0 0.0
        %253 = vmatprep.subr.mxu0 0.0
        %254 = vmatpush1.xpose.msra.mxu0 0.0
        %255 = vmatprep.subr.mxu0 0.0
        %256 = vmatpush1.xpose.msra.mxu0 0.0
        %257 = vmatprep.subr.mxu0 0.0
        %258 = vmatpush1.xpose.msra.mxu0 0.0
        %259 = vmatprep.subr.mxu0 0.0
        %260 = vmatpush1.xpose.msra.mxu0 0.0
        %261 = vmatprep.subr.mxu0 0.0
        %262 = vmatpush1.xpose.msra.mxu0 0.0
        %263 = vmatprep.subr.mxu0 0.0
        %264 = vmatpush1.xpose.msra.mxu0 0.0
        %265 = vmatprep.mubr.f32.mxu0 %v199
        %266 = vmatmul.mubr.f32.gmra.mrb[0].mxu0 %v196
        %v267 = vpop.f32.mrb[0].mxu0
        %v268 = vadd.f32 0.0, %v267
        %v269 = vpop.f32.mrb[0].mxu0
        %270 = vdwg.mxu0
        %v271 = vadd.f32 %v197, %v268
        %vm272 = vcmask 27648
        %273 = vst.msk [vmem:[#allocation2] sm:$0xf] %vm272, %v271
        %v274 = vld [vmem:[#allocation3] sm:$0xf]
        %v275 = vmul.f32 %v196, %v196
        %v277 = vcombine.high %v275, %v275
        %vm279 = vcmask 1043456
        %v280 = vsel %vm279, %v275, 0.0
        %v281 = vsel %vm279, %v277, 0.0
        %v282 = vadd.f32 %v280, %v281
        %283 = vadd.xlane.f32.xlu0 %v282
        %v284 = vpop.xlane.xlu0 %283
        %v285 = vadd.f32 %v274, %v284
        %vm286 = vcmask 3072
        %287 = vst.msk [vmem:[#allocation3] sm:$0xf] %vm286, %v285
        // Predicated region
        $region33: #{tpu_custom_call.1} parent=23 // pred_check
          %p288 = pneg %p188
        $region34: #{tpu_custom_call.1} parent=23 // pred_check_branch
          %290 = sbr.rel (%p288) target = $region36
        $region35: #{tpu_custom_call.1} parent=23 // pred_region
          %v291 = vld [vmem:[#allocation2] sm:$0xf]
          %292 = vst.msk [vmem:[%s176] sm:$0xf] %vm272, %v291
          %v293 = vld [vmem:[#allocation3] sm:$0xf]
          %294 = vst.msk [vmem:[%s187] sm:$0xf] %vm286, %v293
        $region36: #{tpu_custom_call.1} parent=23 // pred_fallthru
          _
        %s295 = sand.u32 %s68, 1
        %s296 = scalar_lea.sflag [#allocation6], %s295
        %s297 = sand.u32 %s68, 1
        %s298 = smul.addr %s297, 4
        %s299 = scalar_lea.vmem [#allocation7], %s298
        %p300 = scmp.lt.s32.totalorder %s24, 1
        %s301 = scalar_select %p300, %s24, 1
        %s302 = smul.addr %s301, 4
        %s303 = scalar_lea.vmem %s2, %s302
        // Predicated region
        $region37: #{tpu_custom_call.1} parent=23 // pred_check
          %p304 = pneg %p78
        $region38: #{tpu_custom_call.1} parent=23 // pred_check_branch
          %306 = sbr.rel (%p304) target = $region40
        $region39: #{tpu_custom_call.1} parent=23 // pred_region
          %s308 = ssub.s32 64, 64
          %309 = vsyncadd %s296, %s308
          %s310 = smul.addr %s24, 64
          %s311 = scalar_lea.hbm %s1, %s310
          %s313 = sshll.u32 %s299, 4
          %s314 = int_to_ptr.vmem [resolvable:$true] %s313
          %316 = dma.vmem_to_hbm [thread:$0]  %s314, 64, %s311, %s296
        $region40: #{tpu_custom_call.1} parent=23 // pred_fallthru
          _
        // Predicated region
        $region41: #{tpu_custom_call.1} parent=23 // pred_check
          %p317 = pneg %p104
        $region42: #{tpu_custom_call.1} parent=23 // pred_check_branch
          %319 = sbr.rel (%p317) target = $region44
        $region43: #{tpu_custom_call.1} parent=23 // pred_region
          _
        $region44: #{tpu_custom_call.1} parent=23 // pred_fallthru
          _
      $region24: #{tpu_custom_call.1} parent=5 // pred_fallthru
        _
      %p320 = scmp.le.s32.totalorder 2, %s15
      // Predicated region
      $region45: #{tpu_custom_call.1} parent=5 // pred_check
        %p321 = pneg %p320
      $region46: #{tpu_custom_call.1} parent=5 // pred_check_branch
        %323 = sbr.rel (%p321) target = $region48
      $region47: #{tpu_custom_call.1} parent=5 // pred_region
        %s324 = ssub.s32 %s15, 2
        // Predicated region
        $region49: #{tpu_custom_call.1} parent=47 // pred_check
          %p325 = pneg %p84
        $region50: #{tpu_custom_call.1} parent=47 // pred_check_branch
          %327 = sbr.rel (%p325) target = $region52
        $region51: #{tpu_custom_call.1} parent=47 // pred_region
          %s328 = sand.u32 %s69, 1
          %s329 = scalar_lea.sflag [#allocation6], %s328
          %s330 = sand.u32 %s69, 1
          %s331 = smul.addr %s330, 4
          %s332 = scalar_lea.vmem [#allocation7], %s331
          %333 = dma.done %s329, 64
        $region52: #{tpu_custom_call.1} parent=47 // pred_fallthru
          _
        // Predicated region
        $region53: #{tpu_custom_call.1} parent=47 // pred_check
          %p334 = pneg %p110
        $region54: #{tpu_custom_call.1} parent=47 // pred_check_branch
          %336 = sbr.rel (%p334) target = $region56
        $region55: #{tpu_custom_call.1} parent=47 // pred_region
          %p337 = scmp.lt.s32.totalorder %s26, 1
          %s338 = scalar_select %p337, %s26, 1
          %s339 = smul.addr %s338, 4
          %s340 = scalar_lea.vmem %s2, %s339
        $region56: #{tpu_custom_call.1} parent=47 // pred_fallthru
          _
      $region48: #{tpu_custom_call.1} parent=5 // pred_fallthru
        _
    $region6: #{tpu_custom_call.1} parent=1 // loop_footer
      %s19 = sadd.s32 1, %s15
    $region7: #{tpu_custom_call.1} parent=1 // loop_footer_branch
      %14 = sbr.rel target = $region3
    $region8: #{tpu_custom_call.1} parent=1 // loop_exit
      _
    %341 = vsyncpa [#allocation5], 1
    %s342 = scalar_lea.sflag [#allocation5], 1
    %343 = vsyncpa %s342, 1
    %344 = vsyncpa [#allocation6], 1
    %s345 = scalar_lea.sflag [#allocation6], 1
    %346 = vsyncpa %s345, 1

</llo_original>
